<compile_context>
chip_gen: v5e
topology: v5e:2x2
jax: 0.10.0
libtpu: 0.0.40
codegen_flags: <defaults>
</compile_context>

<pallas_src>
import functools
import typing as tp

import numpy as np
import jax
import jax.numpy as jnp
from jax.experimental import pallas as pl
from jax.experimental.pallas import tpu as pltpu


class Neighbors(tp.NamedTuple):
    """Result of the neighborlist calculation (matches torchani.neighbors.Neighbors)."""
    indices: jnp.ndarray       # (2, P)  int32   (torch uses int64; int32 here)
    distances: jnp.ndarray     # (P,)    float32
    diff_vectors: jnp.ndarray  # (P, 3)  float32


def _round_up(x: int, m: int) -> int:
    return ((x + m - 1) // m) * m


_POISON = 1.0e20  # per-atom-distinct poison base for dummy / padded atoms


# Layout: coords are passed twice — as (ni, 3) (atom-i on sublanes) and as
# (3, nj) (atom-j on lanes) — so the broadcast (TI,1) op (1,TJ) maps straight
# onto the VPU with no in-kernel transposes.  Dummy and padded atoms carry
# huge distinct poison coordinates, so dist<=cutoff rejects them.
def _pairs_kernel(bi_ref, bj_ref, ci_ref, cj_ref, dist_ref, cnt_ref, *, cutoff: float):
    ti = ci_ref.shape[0]
    tj = cj_ref.shape[1]
    t = pl.program_id(0)
    i0 = bi_ref[t] * ti          # global row offset of this tile
    j0 = bj_ref[t] * tj          # global col offset of this tile

    c = ci_ref[...]              # (TI, 3) f32
    ct = cj_ref[...]             # (3, TJ) f32
    # diff[i, j] = coords[i] - coords[j]   (same sign convention as torch)
    dx = c[:, 0:1] - ct[0:1, :]
    dy = c[:, 1:2] - ct[1:2, :]
    dz = c[:, 2:3] - ct[2:3, :]  # (TI, TJ)
    dist = jnp.sqrt(dx * dx + dy * dy + dz * dz)
    in_cut = dist <= cutoff

    def _emit(valid):
        dist_ref[0, :, :] = jnp.where(valid, dist, jnp.float32(-1.0))
        rows = jnp.sum(valid.astype(jnp.float32), axis=1, keepdims=True)   # (TI, 1)
        cnt_ref[0, :, :] = jnp.sum(rows, axis=0, keepdims=True)            # (1, 1)

    # Tiles strictly above the diagonal need no triangle mask at all.
    fully_upper = j0 > (i0 + (ti - 1))

    @pl.when(fully_upper)
    def _upper():
        _emit(in_cut)

    @pl.when(jnp.logical_not(fully_upper))
    def _straddle():
        ii = jax.lax.broadcasted_iota(jnp.int32, (ti, 1), 0) + i0   # (TI, 1)
        jj = jax.lax.broadcasted_iota(jnp.int32, (1, tj), 1) + j0   # (1, TJ)
        _emit(in_cut & (jj > ii))


def _pairwise_distance_tiles(cutoff: float, species, coords,
                             tile_i: int = 1024, tile_j: int = 1024):
    """Sentinel-encoded (num_tiles, ti, tj) distance tiles (valid >= 0, invalid = -1)
    over the upper-triangular tile grid, plus per-tile valid-pair counts."""
    assert tile_i % 8 == 0 and tile_j % 128 == 0
    M, N = species.shape
    assert M == 1

    ti = min(tile_i, _round_up(N, 8))      # sublane axis: pad only to 8 / TI
    tj = min(tile_j, _round_up(N, 128))    # lane axis: pad only to 128 / TJ
    ni = _round_up(N, ti)
    nj = _round_up(N, tj)
    nbi, nbj = ni // ti, nj // tj

    # Static triangular tile table: keep only tiles that can hold a j > i pair.
    tile_list = [(bi, bj) for bi in range(nbi) for bj in range(nbj)
                 if bj * tj + (tj - 1) > bi * ti]
    nt = len(tile_list)
    bi_tbl = jnp.asarray([t[0] for t in tile_list], dtype=jnp.int32)
    bj_tbl = jnp.asarray([t[1] for t in tile_list], dtype=jnp.int32)

    # Poisoned coordinates: dummy (species==-1) and padded atoms get a per-atom
    # distinct huge coordinate, so every pair touching them fails dist<=cutoff
    # (distinct values keep dummy-dummy / pad-pad differences >= 1e20 as well).
    npad = max(ni, nj)
    sp = species.reshape(N).astype(jnp.int32)
    c32 = coords.reshape(N, 3).astype(jnp.float32)
    poison = (jnp.arange(npad, dtype=jnp.float32) + 1.0) * jnp.float32(_POISON)
    good = jnp.zeros((npad,), jnp.bool_).at[:N].set(sp != -1)
    cfull = jnp.zeros((npad, 3), jnp.float32).at[:N, :].set(c32)
    cpois = jnp.where(good[:, None], cfull, poison[:, None])   # (npad, 3)
    ci = cpois[:ni]                                            # (ni, 3) atoms on sublanes
    cj = jnp.swapaxes(cpois[:nj], 0, 1)                        # (3, nj) atoms on lanes

    # cutoff == inf keeps every real pair in the reference; clamp it so the
    # poisoned (inf) distances still fail the comparison.
    cut_eff = min(float(cutoff), float(np.finfo(np.float32).max))

    kernel = functools.partial(_pairs_kernel, cutoff=cut_eff)
    dist, cnt = pl.pallas_call(
        kernel,
        out_shape=(jax.ShapeDtypeStruct((nt, ti, tj), jnp.float32),
                   jax.ShapeDtypeStruct((nt, 1, 1), jnp.float32)),
        grid_spec=pltpu.PrefetchScalarGridSpec(
            num_scalar_prefetch=2,
            grid=(nt,),
            in_specs=[
                pl.BlockSpec((ti, 3), lambda t, bi, bj: (bi[t], 0)),   # coords_i
                pl.BlockSpec((3, tj), lambda t, bi, bj: (0, bj[t])),   # coords_j
            ],
            out_specs=[
                pl.BlockSpec((1, ti, tj), lambda t, bi, bj: (t, 0, 0)),  # sentinel dist
                pl.BlockSpec((1, 1, 1), lambda t, bi, bj: (t, 0, 0)),    # per-tile count
            ],
        ),
        compiler_params=pltpu.CompilerParams(
            dimension_semantics=("parallel",)),
    )(bi_tbl, bj_tbl, ci, cj)
    return dist, cnt, bi_tbl, bj_tbl, ti, tj, nj


class AdaptiveListPallas:
    """JAX/Pallas implementation of torchani.neighbors.AdaptiveList.forward (no-PBC path)."""

    def __init__(self, threshold: int = 190, threshold_nopbc: int = 1770,
                 tile_i: int = 1024, tile_j: int = 1024) -> None:
        # 1024^2 f32 tiles (8 MiB double-buffered output) fit the scoped-VMEM
        # defaults on v5e (16 MiB), v6e (32 MiB) and v7x (32 MiB of 64 MiB).
        self._thresh = threshold
        self._thresh_nopbc = threshold_nopbc
        assert tile_i % 8 == 0 and tile_j % 128 == 0
        self._tile_i = tile_i
        self._tile_j = tile_j

    def __call__(self, cutoff: float, species, coords, cell=None, pbc=None) -> Neighbors:
        # _validate_inputs semantics (supports_batches=False, no individual pbc)
        if cutoff <= 0.0:
            raise ValueError("Cutoff must be a strictly positive float")
        if coords.shape[0] != 1:
            raise ValueError("This neighborlist doesn't support batches")
        if pbc is not None or cell is not None:
            # TODO(synk): PBC / cell_list branch (bincount/argsort/repeat_interleave with
            # dynamic shapes) has no clean static-shape Pallas equivalent; not implemented.
            raise NotImplementedError("PBC / cell_list path not implemented in Pallas port")

        M, N = species.shape
        dist, cnt, bi_tbl, bj_tbl, ti, tj, nj = _pairwise_distance_tiles(
            cutoff, species, coords, self._tile_i, self._tile_j)

        # Only the pair count (one scalar) is synced to host; it comes from the
        # tiny per-tile counters, not a re-scan of the full distance matrix.
        count = int(jax.device_get(jnp.sum(cnt.astype(jnp.int32))))
        if count == 0:
            return Neighbors(indices=jnp.zeros((2, 0), jnp.int32),
                             distances=jnp.zeros((0,), jnp.float32),
                             diff_vectors=jnp.zeros((0, 3), jnp.float32))

        flat = dist.reshape(-1)
        # Bucket the nonzero size to a power of two to limit recompiles across calls.
        cap = min(1 << (count - 1).bit_length(), int(flat.shape[0]))
        (flat_idx,) = jnp.nonzero(flat >= 0.0, size=cap, fill_value=0)

        per_tile = ti * tj
        t_idx = flat_idx // per_tile
        rem = flat_idx - t_idx * per_tile
        il = rem // tj
        jl = rem - il * tj
        gi = (bi_tbl[t_idx] * ti + il).astype(jnp.int32)
        gj = (bj_tbl[t_idx] * tj + jl).astype(jnp.int32)

        # Restore the reference pair ordering (row-major upper triangle): sort the
        # compacted survivors by (i, j); fill rows get an INT_MAX key -> end.
        key = gi * jnp.int32(nj) + gj        # ok for N << 46k (all_pairs regime)
        key = jnp.where(jnp.arange(cap) < count, key, jnp.iinfo(jnp.int32).max)
        order = jnp.argsort(key)

        gi = gi[order]
        gj = gj[order]
        distances = flat[flat_idx][order]
        coords_flat = coords.reshape(-1, 3).astype(jnp.float32)
        diff = coords_flat[gi] - coords_flat[gj]   # same f32 subtraction as in-kernel
        indices = jnp.stack([gi, gj], axis=0)

        return Neighbors(indices=indices[:, :count],
                         distances=distances[:count],
                         diff_vectors=diff[:count, :])


def _numpy_reference(cutoff, species, coords):
    """Vectorized numpy transcription of torch all_pairs/narrow_down (no-PBC)."""
    sp = np.asarray(species).reshape(-1)
    c = np.asarray(coords, dtype=np.float32).reshape(-1, 3)
    n = sp.shape[0]
    i, j = np.triu_indices(n, k=1)
    keep = (sp[i] != -1) & (sp[j] != -1)
    i, j = i[keep], j[keep]
    diff = c[i] - c[j]
    d = np.sqrt((diff * diff).sum(-1))
    keep2 = d <= cutoff
    i, j, d, diff = i[keep2], j[keep2], d[keep2], diff[keep2]
    return (np.stack([i, j]).astype(np.int32), d.astype(np.float32),
            diff.astype(np.float32))


def _check(out: Neighbors, ref):
    ref_idx, ref_d, ref_v = ref
    assert np.array_equal(np.asarray(out.indices), ref_idx), "indices mismatch"
    assert np.allclose(np.asarray(out.distances), ref_d, rtol=1e-5, atol=1e-5)
    assert np.allclose(np.asarray(out.diff_vectors), ref_v, rtol=1e-5, atol=1e-5)


if __name__ == "__main__":
    key = jax.random.PRNGKey(0)
    k1, k2, k3 = jax.random.split(key, 3)
    cutoff = 5.2

    # Test 1: small molecule with dummy atoms (single-tile grid, default tiles).
    N = 16
    coords = jax.random.uniform(k1, (1, N, 3), jnp.float32, 0.0, 8.0)
    species = jnp.array([[1, 6, 6, 1, 8, 1, 7, 6, 1, 1, 6, 8, -1, -1, 1, 6]],
                        dtype=jnp.int32)   # two dummy atoms
    nl = AdaptiveListPallas()
    out = nl(cutoff, species, coords)
    jax.block_until_ready(out.distances)
    _check(out, _numpy_reference(cutoff, species, coords))

    # Test 2: forced tiny tiles -> triangular multi-tile grid exercising both
    # the diagonal-straddling and fully-upper kernel branches, dropped
    # lower-triangle tiles, and dummy atoms.
    N2 = 200
    coords2 = jax.random.uniform(k2, (1, N2, 3), jnp.float32, 0.0, 20.0)
    species2 = jnp.where(jnp.arange(N2) % 17 == 0, -1, 6)[None, :].astype(jnp.int32)
    nl_small = AdaptiveListPallas(tile_i=8, tile_j=128)
    out2 = nl_small(cutoff, species2, coords2)
    jax.block_until_ready(out2.distances)
    _check(out2, _numpy_reference(cutoff, species2, coords2))

    # Test 3: medium molecule, default tiles, infinite cutoff (keeps every real pair).
    N3 = 96
    coords3 = jax.random.uniform(k3, (1, N3, 3), jnp.float32, 0.0, 12.0)
    species3 = jnp.where(jnp.arange(N3) % 23 == 0, -1, 8)[None, :].astype(jnp.int32)
    out3 = nl(float("inf"), species3, coords3)
    jax.block_until_ready(out3.distances)
    _check(out3, _numpy_reference(float("inf"), species3, coords3))

    print("KERNEL_OK")
</pallas_src>

<mosaic_0001>
module attributes {stable_mosaic.version = 11 : i64} {
  func.func @_pairs_kernel(%arg0: i32, %arg1: memref<1xi32, #tpu.memory_space<smem>>, %arg2: memref<1xi32, #tpu.memory_space<smem>>, %arg3: memref<16x3xf32, #tpu.memory_space<vmem>>, %arg4: memref<3x128xf32, #tpu.memory_space<vmem>>, %arg5: memref<1x16x128xf32, #tpu.memory_space<vmem>>, %arg6: memref<1x1x1xf32, #tpu.memory_space<vmem>>) attributes {dimension_semantics = [#tpu.dimension_semantics<parallel>], iteration_bounds = array<i64: 1>, scalar_prefetch = 2 : i64, scratch_operands = 0 : i64, tpu.core_type = #tpu.core_type<tc>, window_params = [{transform_indices = @transform_0, window_bounds = array<i64: 16, 3>}, {transform_indices = @transform_1, window_bounds = array<i64: 3, 128>}, {transform_indices = @transform_2, window_bounds = array<i64: 1, 16, 128>}, {transform_indices = @transform_3, window_bounds = array<i64: 1, 1, 1>}]} {
    %0 = arith.index_cast %arg0 : i32 to index
    %1 = memref.load %arg1[%0] : memref<1xi32, #tpu.memory_space<smem>>
    %c16_i32 = arith.constant 16 : i32
    %2 = arith.muli %1, %c16_i32 : i32
    %3 = arith.index_cast %arg0 : i32 to index
    %4 = memref.load %arg2[%3] : memref<1xi32, #tpu.memory_space<smem>>
    %c128_i32 = arith.constant 128 : i32
    %5 = arith.muli %4, %c128_i32 : i32
    %c0 = arith.constant 0 : index
    %c0_0 = arith.constant 0 : index
    %6 = vector.load %arg3[%c0, %c0_0] : memref<16x3xf32, #tpu.memory_space<vmem>>, vector<16x3xf32>
    %c0_1 = arith.constant 0 : index
    %c0_2 = arith.constant 0 : index
    %7 = vector.load %arg4[%c0_1, %c0_2] : memref<3x128xf32, #tpu.memory_space<vmem>>, vector<3x128xf32>
    %8 = vector.extract_strided_slice %6 {offsets = [0, 0], sizes = [16, 1], strides = [1, 1]} : vector<16x3xf32> to vector<16x1xf32>
    %9 = vector.extract_strided_slice %7 {offsets = [0, 0], sizes = [1, 128], strides = [1, 1]} : vector<3x128xf32> to vector<1x128xf32>
    %10 = vector.broadcast %8 : vector<16x1xf32> to vector<16x128xf32>
    %11 = vector.broadcast %9 : vector<1x128xf32> to vector<16x128xf32>
    %12 = arith.subf %10, %11 : vector<16x128xf32>
    %13 = vector.extract_strided_slice %6 {offsets = [0, 1], sizes = [16, 1], strides = [1, 1]} : vector<16x3xf32> to vector<16x1xf32>
    %14 = vector.extract_strided_slice %7 {offsets = [1, 0], sizes = [1, 128], strides = [1, 1]} : vector<3x128xf32> to vector<1x128xf32>
    %15 = vector.broadcast %13 : vector<16x1xf32> to vector<16x128xf32>
    %16 = vector.broadcast %14 : vector<1x128xf32> to vector<16x128xf32>
    %17 = arith.subf %15, %16 : vector<16x128xf32>
    %18 = vector.extract_strided_slice %6 {offsets = [0, 2], sizes = [16, 1], strides = [1, 1]} : vector<16x3xf32> to vector<16x1xf32>
    %19 = vector.extract_strided_slice %7 {offsets = [2, 0], sizes = [1, 128], strides = [1, 1]} : vector<3x128xf32> to vector<1x128xf32>
    %20 = vector.broadcast %18 : vector<16x1xf32> to vector<16x128xf32>
    %21 = vector.broadcast %19 : vector<1x128xf32> to vector<16x128xf32>
    %22 = arith.subf %20, %21 : vector<16x128xf32>
    %23 = arith.mulf %12, %12 : vector<16x128xf32>
    %24 = arith.mulf %17, %17 : vector<16x128xf32>
    %25 = arith.addf %23, %24 : vector<16x128xf32>
    %26 = arith.mulf %22, %22 : vector<16x128xf32>
    %27 = arith.addf %25, %26 : vector<16x128xf32>
    %28 = math.sqrt %27 : vector<16x128xf32>
    %cst = arith.constant 5.200000e+00 : f32
    %29 = vector.broadcast %cst : f32 to vector<16x128xf32>
    %30 = arith.cmpf ole, %28, %29 : vector<16x128xf32>
    %c15_i32 = arith.constant 15 : i32
    %31 = arith.addi %2, %c15_i32 : i32
    %32 = arith.cmpi sgt, %5, %31 : i32
    %33 = arith.extui %32 : i1 to i32
    %c0_i32 = arith.constant 0 : i32
    %34 = arith.cmpi ne, %33, %c0_i32 : i32
    scf.if %34 {
      %cst_4 = arith.constant -1.000000e+00 : f32
      %38 = vector.broadcast %cst_4 : f32 to vector<16x128xf32>
      %39 = arith.select %30, %28, %38 : vector<16x128xi1>, vector<16x128xf32>
      %c0_5 = arith.constant 0 : index
      %c0_6 = arith.constant 0 : index
      %c0_7 = arith.constant 0 : index
      %40 = vector.load %arg5[%c0_5, %c0_6, %c0_7] : memref<1x16x128xf32, #tpu.memory_space<vmem>>, vector<1x16x128xf32>
      %41 = vector.shape_cast %40 : vector<1x16x128xf32> to vector<16x128xf32>
      %42 = vector.shape_cast %39 : vector<16x128xf32> to vector<1x16x128xf32>
      tpu.vector_store %arg5[%c0_5, %c0_6, %c0_7], %42 {strides = array<i32>} : memref<1x16x128xf32, #tpu.memory_space<vmem>>, vector<1x16x128xf32>,
      %43 = arith.extui %30 : vector<16x128xi1> to vector<16x128xi32>
      %44 = arith.sitofp %43 : vector<16x128xi32> to vector<16x128xf32>
      %cst_8 = arith.constant dense<0.000000e+00> : vector<16xf32>
      %45 = vector.multi_reduction <add>, %44, %cst_8 [1] : vector<16x128xf32> to vector<16xf32>
      %46 = vector.shape_cast %45 : vector<16xf32> to vector<16x1xf32>
      %cst_9 = arith.constant dense<0.000000e+00> : vector<1xf32>
      %47 = vector.multi_reduction <add>, %46, %cst_9 [0] : vector<16x1xf32> to vector<1xf32>
      %48 = vector.shape_cast %47 : vector<1xf32> to vector<1x1xf32>
      %c0_10 = arith.constant 0 : index
      %c0_11 = arith.constant 0 : index
      %c0_12 = arith.constant 0 : index
      %49 = vector.load %arg6[%c0_10, %c0_11, %c0_12] : memref<1x1x1xf32, #tpu.memory_space<vmem>>, vector<1x1x1xf32>
      %50 = vector.shape_cast %49 : vector<1x1x1xf32> to vector<1x1xf32>
      %51 = vector.shape_cast %48 : vector<1x1xf32> to vector<1x1x1xf32>
      tpu.vector_store %arg6[%c0_10, %c0_11, %c0_12], %51 {strides = array<i32>} : memref<1x1x1xf32, #tpu.memory_space<vmem>>, vector<1x1x1xf32>,
    } else {
    }
    %true = arith.constant true
    %35 = arith.xori %32, %true : i1
    %36 = arith.extui %35 : i1 to i32
    %c0_i32_3 = arith.constant 0 : i32
    %37 = arith.cmpi ne, %36, %c0_i32_3 : i32
    scf.if %37 {
      %38 = tpu.iota {dimensions = array<i32: 0>} : vector<16x1xi32>
      %39 = vector.broadcast %2 : i32 to vector<16x1xi32>
      %40 = arith.addi %38, %39 : vector<16x1xi32>
      %41 = tpu.iota {dimensions = array<i32: 1>} : vector<1x128xi32>
      %42 = vector.broadcast %5 : i32 to vector<1x128xi32>
      %43 = arith.addi %41, %42 : vector<1x128xi32>
      %44 = vector.broadcast %43 : vector<1x128xi32> to vector<16x128xi32>
      %45 = vector.broadcast %40 : vector<16x1xi32> to vector<16x128xi32>
      %46 = arith.cmpi sgt, %44, %45 : vector<16x128xi32>
      %47 = arith.andi %30, %46 : vector<16x128xi1>
      %cst_4 = arith.constant -1.000000e+00 : f32
      %48 = vector.broadcast %cst_4 : f32 to vector<16x128xf32>
      %49 = arith.select %47, %28, %48 : vector<16x128xi1>, vector<16x128xf32>
      %c0_5 = arith.constant 0 : index
      %c0_6 = arith.constant 0 : index
      %c0_7 = arith.constant 0 : index
      %50 = vector.load %arg5[%c0_5, %c0_6, %c0_7] : memref<1x16x128xf32, #tpu.memory_space<vmem>>, vector<1x16x128xf32>
      %51 = vector.shape_cast %50 : vector<1x16x128xf32> to vector<16x128xf32>
      %52 = vector.shape_cast %49 : vector<16x128xf32> to vector<1x16x128xf32>
      tpu.vector_store %arg5[%c0_5, %c0_6, %c0_7], %52 {strides = array<i32>} : memref<1x16x128xf32, #tpu.memory_space<vmem>>, vector<1x16x128xf32>,
      %53 = arith.extui %47 : vector<16x128xi1> to vector<16x128xi32>
      %54 = arith.sitofp %53 : vector<16x128xi32> to vector<16x128xf32>
      %cst_8 = arith.constant dense<0.000000e+00> : vector<16xf32>
      %55 = vector.multi_reduction <add>, %54, %cst_8 [1] : vector<16x128xf32> to vector<16xf32>
      %56 = vector.shape_cast %55 : vector<16xf32> to vector<16x1xf32>
      %cst_9 = arith.constant dense<0.000000e+00> : vector<1xf32>
      %57 = vector.multi_reduction <add>, %56, %cst_9 [0] : vector<16x1xf32> to vector<1xf32>
      %58 = vector.shape_cast %57 : vector<1xf32> to vector<1x1xf32>
      %c0_10 = arith.constant 0 : index
      %c0_11 = arith.constant 0 : index
      %c0_12 = arith.constant 0 : index
      %59 = vector.load %arg6[%c0_10, %c0_11, %c0_12] : memref<1x1x1xf32, #tpu.memory_space<vmem>>, vector<1x1x1xf32>
      %60 = vector.shape_cast %59 : vector<1x1x1xf32> to vector<1x1xf32>
      %61 = vector.shape_cast %58 : vector<1x1xf32> to vector<1x1x1xf32>
      tpu.vector_store %arg6[%c0_10, %c0_11, %c0_12], %61 {strides = array<i32>} : memref<1x1x1xf32, #tpu.memory_space<vmem>>, vector<1x1x1xf32>,
    } else {
    }
    return
  }
  func.func @transform_0(%arg0: i32, %arg1: memref<1xi32, #tpu.memory_space<smem>>, %arg2: memref<1xi32, #tpu.memory_space<smem>>) -> (i32, i32) {
    %0 = arith.index_cast %arg0 : i32 to index
    %1 = memref.load %arg1[%0] : memref<1xi32, #tpu.memory_space<smem>>
    %c0_i32 = arith.constant 0 : i32
    %c0_i32_0 = arith.constant 0 : i32
    return %1, %c0_i32 : i32, i32
  }
  func.func @transform_1(%arg0: i32, %arg1: memref<1xi32, #tpu.memory_space<smem>>, %arg2: memref<1xi32, #tpu.memory_space<smem>>) -> (i32, i32) {
    %0 = arith.index_cast %arg0 : i32 to index
    %1 = memref.load %arg2[%0] : memref<1xi32, #tpu.memory_space<smem>>
    %c0_i32 = arith.constant 0 : i32
    %c0_i32_0 = arith.constant 0 : i32
    return %c0_i32, %1 : i32, i32
  }
  func.func @transform_2(%arg0: i32, %arg1: memref<1xi32, #tpu.memory_space<smem>>, %arg2: memref<1xi32, #tpu.memory_space<smem>>) -> (i32, i32, i32) {
    %c0_i32 = arith.constant 0 : i32
    %c0_i32_0 = arith.constant 0 : i32
    %c0_i32_1 = arith.constant 0 : i32
    return %arg0, %c0_i32, %c0_i32_0 : i32, i32, i32
  }
  func.func @transform_3(%arg0: i32, %arg1: memref<1xi32, #tpu.memory_space<smem>>, %arg2: memref<1xi32, #tpu.memory_space<smem>>) -> (i32, i32, i32) {
    %c0_i32 = arith.constant 0 : i32
    %c0_i32_0 = arith.constant 0 : i32
    %c0_i32_1 = arith.constant 0 : i32
    return %arg0, %c0_i32, %c0_i32_0 : i32, i32, i32
  }
}

</mosaic_0001>

<llo_original>
// kernel: tpu_custom_call.1
$region0: #{tpu_custom_call.1}
  #allocation0 [shape = 'u32[]', space=smem, size = 0x4, offset = 0x4, fixed_abs, tag = 'smem constant byte address 0x4 - core index']
  #allocation1 [shape = 'u32[72,128]{1,0:T(1,128)}', space=vmem, size = 0x9000, scoped, tag = 'internal scratch']
  #allocation2 [shape = 's32[1]{0}', space=sflag, size = 0x4, scoped, tag = 'scoped memory for tpu_custom_call.1']
  #allocation3 [shape = 's32[1]{0:T(128)S(6)}', space=smem, size = 0x200, scoped, tag = 'prefetched SMEM operand 0']
  #allocation4 [shape = 's32[1]{0:T(128)S(6)}', space=smem, size = 0x200, scoped, tag = 'prefetched SMEM operand 1']
  %s0 = inlined_call_operand.<no memory space> [shape: s32[1], index: 0, kind: input, shape index: {}]
  %s1 = inlined_call_operand.<no memory space> [shape: s32[1], index: 1, kind: input, shape index: {}]
  %s2 = inlined_call_operand.vmem [shape: f32[16,3], index: 2, kind: input, shape index: {}]
  %s3 = inlined_call_operand.vmem [shape: f32[3,128], index: 3, kind: input, shape index: {}]
  %s4 = inlined_call_operand.hbm [shape: f32[1,16,128], index: 4, kind: output, shape index: {0}]
  %s5 = inlined_call_operand.hbm [shape: f32[1,1,1], index: 5, kind: output, shape index: {1}]
  %6 = xla_tuple %s4, %s5
  %s7 = sld [smem:[#allocation0]]
  $region34: #{tpu_custom_call.1} parent=0
    _
  %s9 = ssub.s32 1, %s7
  %s10 = scalar_select 0, %s9, %s7
  %11 = sst [smem:[#allocation3]] %s0
  %12 = sst [smem:[#allocation4]] %s1
  $region1: #{tpu_custom_call.1} parent=0
    #allocation5 [shape = 'u8[8192]{0}', space=vmem, size = 0x2000, scoped, tag = 'output window, operand 0, single buffered']
    #allocation6 [shape = 's32[1]{0}', space=sflag, size = 0x4, scoped, tag = 'scoped memory for tpu_custom_call.1']
    #allocation7 [shape = 'u8[512]{0}', space=vmem, size = 0x400, scoped, tag = 'output window, operand 1, single buffered']
    #allocation8 [shape = 's32[1]{0}', space=sflag, size = 0x4, scoped, tag = 'scoped memory for tpu_custom_call.1']
    %13 = vsyncpa [#allocation6], 0
    %14 = vsyncpa [#allocation8], 0
    // Predicated region
    $region2: #{tpu_custom_call.1} parent=1 // pred_check
      _
    $region3: #{tpu_custom_call.1} parent=1 // pred_check_branch
      %16 = sbr.rel (0) target = $region5
    $region4: #{tpu_custom_call.1} parent=1 // pred_region
      %s17 = sld [smem:[#allocation3]]
      %s18 = smul.u32 2, %s17
      %p19 = scmp.lt.s32.totalorder %s18, 1
      %s20 = scalar_select %p19, %s18, 1
      %s21 = smul.addr %s20, 8
      %s22 = scalar_lea.vmem %s2, %s21
      %s23 = sld [smem:[#allocation3]]
      %s24 = smul.u32 2, %s23
    $region5: #{tpu_custom_call.1} parent=1 // pred_fallthru
      _
    // Predicated region
    $region6: #{tpu_custom_call.1} parent=1 // pred_check
      _
    $region7: #{tpu_custom_call.1} parent=1 // pred_check_branch
      %26 = sbr.rel (0) target = $region9
    $region8: #{tpu_custom_call.1} parent=1 // pred_region
      %s27 = sld [smem:[#allocation4]]
      %p28 = scmp.lt.s32.totalorder %s27, 0
      %s29 = scalar_select %p28, %s27, 0
      %s30 = smul.addr %s29, 4
      %s31 = scalar_lea.vmem %s3, %s30
      %s32 = sld [smem:[#allocation4]]
    $region9: #{tpu_custom_call.1} parent=1 // pred_fallthru
      _
    %s33 = sld [smem:[#allocation3]]
    %s34 = smul.u32 2, %s33
    %p35 = scmp.lt.s32.totalorder %s34, 1
    %s36 = scalar_select %p35, %s34, 1
    %s37 = smul.addr %s36, 8
    %s38 = scalar_lea.vmem %s2, %s37
    %s39 = sld [smem:[#allocation4]]
    %p40 = scmp.lt.s32.totalorder %s39, 0
    %s41 = scalar_select %p40, %s39, 0
    %s42 = smul.addr %s41, 4
    %s43 = scalar_lea.vmem %s3, %s42
    %s44 = sld [smem:[#allocation3]]
    %s45 = smul.u32 2, %s44
    %p46 = scmp.lt.s32.totalorder %s45, 1
    %s47 = scalar_select %p46, %s45, 1
    %s48 = smul.addr %s47, 8
    %s49 = scalar_lea.vmem %s2, %s48
    %s50 = sld [smem:[#allocation3]]
    %s51 = smul.u32 2, %s50
    %s52 = sld [smem:[#allocation4]]
    %p53 = scmp.lt.s32.totalorder %s52, 0
    %s54 = scalar_select %p53, %s52, 0
    %s55 = smul.addr %s54, 4
    %s56 = scalar_lea.vmem %s3, %s55
    %s57 = sld [smem:[#allocation4]]
    %s58 = sld [smem:[#allocation3]]
    %s59 = smul.u32 %s58, 16
    %s60 = sld [smem:[#allocation4]]
    %s61 = smul.u32 %s60, 128
    %v62 = vld [vmem:[%s49] sm:$0xff]
    %v63 = vld [vmem:[%s49 + $0x8] sm:$0xff]
    %v64 = vld [vmem:[%s56] sm:$0x7]
    %66 = vset.pattern.permute.xlu0 0
    %67 = vperm.xlu0 %66, %v62
    %v68 = vpop.permute.xlu0 %67
    %71 = vset.pattern.permute.xlu0 0
    %72 = vperm.xlu0 %71, %v63
    %v73 = vpop.permute.xlu0 %72
    %v75 = vperm.slane %v64, 0
    %v76 = vsub.f32 %v68, %v75
    %v77 = vsub.f32 %v73, %v75
    %78 = vset.pattern.permute.xlu0 1
    %79 = vperm.xlu0 %78, %v62
    %v80 = vpop.permute.xlu0 %79
    %82 = vset.pattern.permute.xlu0 1
    %83 = vperm.xlu0 %82, %v63
    %v84 = vpop.permute.xlu0 %83
    %v86 = vperm.slane %v64, 1
    %v87 = vsub.f32 %v80, %v86
    %v88 = vsub.f32 %v84, %v86
    %89 = vset.pattern.permute.xlu0 2
    %90 = vperm.xlu0 %89, %v62
    %v91 = vpop.permute.xlu0 %90
    %93 = vset.pattern.permute.xlu0 2
    %94 = vperm.xlu0 %93, %v63
    %v95 = vpop.permute.xlu0 %94
    %v97 = vperm.slane %v64, 2
    %v98 = vsub.f32 %v91, %v97
    %v99 = vsub.f32 %v95, %v97
    %v100 = vmul.f32 %v76, %v76
    %v101 = vmul.f32 %v77, %v77
    %v102 = vmul.f32 %v87, %v87
    %v103 = vmul.f32 %v88, %v88
    %v104 = vadd.f32 %v100, %v102
    %v105 = vadd.f32 %v101, %v103
    %v106 = vmul.f32 %v98, %v98
    %v107 = vmul.f32 %v99, %v99
    %v108 = vadd.f32 %v104, %v106
    %v109 = vadd.f32 %v105, %v107
    %v110 = vrsqrt.pop %v108
    %v111 = vmul.f32 %v110, %v108
    %v112 = vmul.f32 %v111, %v110
    %v113 = vmul.f32 0.5, %v112
    %v114 = vsub.f32 1.5, %v113
    %v115 = vmul.f32 %v110, %v114
    %v116 = vmul.f32 %v108, %v115
    %vm117 = vcmp.eq.f32.partialorder %v108, inf
    %v118 = vsel %vm117, %v108, %v116
    %vm119 = vcmp.eq.f32.partialorder %v108, 0.0
    %v120 = vand.u32 %v108, 2147483648
    %v121 = vsel %vm119, %v120, %v118
    %v122 = vrsqrt.pop %v109
    %v123 = vmul.f32 %v122, %v109
    %v124 = vmul.f32 %v123, %v122
    %v125 = vmul.f32 0.5, %v124
    %v126 = vsub.f32 1.5, %v125
    %v127 = vmul.f32 %v122, %v126
    %v128 = vmul.f32 %v109, %v127
    %vm129 = vcmp.eq.f32.partialorder %v109, inf
    %v130 = vsel %vm129, %v109, %v128
    %vm131 = vcmp.eq.f32.partialorder %v109, 0.0
    %v132 = vand.u32 %v109, 2147483648
    %v133 = vsel %vm131, %v132, %v130
    %vm134 = vcmp.le.f32.partialorder %v121, 5.2
    %vm135 = vcmp.le.f32.partialorder %v133, 5.2
    %s136 = sadd.s32 %s59, 15
    %p137 = scmp.gt.s32.totalorder %s61, %s136
    // Predicated region
    $region10: #{tpu_custom_call.1} parent=1 // pred_check
      %p138 = pneg %p137
    $region11: #{tpu_custom_call.1} parent=1 // pred_check_branch
      %140 = sbr.rel (%p138) target = $region13
    $region12: #{tpu_custom_call.1} parent=1 // pred_region
      %v141 = vsel %vm134, %v121, -1.0
      %v142 = vsel %vm135, %v133, -1.0
      %143 = vst [vmem:[#allocation5] sm:$0xff] %v141
      %144 = vst [vmem:[#allocation5 + $0x8] sm:$0xff] %v142
      %v145 = vsel %vm134, 1, 0
      %v146 = vsel %vm135, 1, 0
      %v147 = vcvt.s32.f32 %v145
      %v148 = vcvt.s32.f32 %v146
      %149 = vadd.xlane.f32.xlu0 %v147
      %v150 = vpop.xlane.xlu0 %149
      %151 = vadd.xlane.f32.xlu0 %v148
      %v152 = vpop.xlane.xlu0 %151
      %v153 = vadd.f32 %v150, %v152
      %v154 = vrot.slane %v153, 4
      %v155 = vadd.f32 %v153, %v154
      %v156 = vrot.slane %v155, 2
      %v157 = vadd.f32 %v155, %v156
      %v158 = vrot.slane %v157, 1
      %v159 = vadd.f32 %v157, %v158
      %vm160 = vcmask 0
      %161 = vst.msk [vmem:[#allocation7] sm:$0x1] %vm160, %v159
    $region13: #{tpu_custom_call.1} parent=1 // pred_fallthru
      _
    %p162 = scmp.le.s32.totalorder %s61, %s136
    // Predicated region
    $region14: #{tpu_custom_call.1} parent=1 // pred_check
      %p163 = pneg %p162
    $region15: #{tpu_custom_call.1} parent=1 // pred_check_branch
      %165 = sbr.rel (%p163) target = $region17
    $region16: #{tpu_custom_call.1} parent=1 // pred_region
      %v166 = vlaneseq
      %v167 = vshrl.u32 %v166, 7
      %v168 = vadd.s32 %v167, 8
      %v169 = vstv %s59
      %v170 = vadd.s32 %v167, %v169
      %v171 = vadd.s32 %v168, %v169
      %v172 = vlaneseq
      %v173 = vand.u32 %v172, 127
      %v174 = vstv %s61
      %v175 = vadd.s32 %v173, %v174
      %vm176 = vcmp.gt.s32.totalorder %v175, %v170
      %vm177 = vcmp.gt.s32.totalorder %v175, %v171
      %vm178 = vmand %vm134, %vm176
      %vm179 = vmand %vm135, %vm177
      %v180 = vsel %vm178, %v121, -1.0
      %v181 = vsel %vm179, %v133, -1.0
      %182 = vst [vmem:[#allocation5] sm:$0xff] %v180
      %183 = vst [vmem:[#allocation5 + $0x8] sm:$0xff] %v181
      %v184 = vsel %vm178, 1, 0
      %v185 = vsel %vm179, 1, 0
      %v186 = vcvt.s32.f32 %v184
      %v187 = vcvt.s32.f32 %v185
      %188 = vadd.xlane.f32.xlu0 %v186
      %v189 = vpop.xlane.xlu0 %188
      %190 = vadd.xlane.f32.xlu0 %v187
      %v191 = vpop.xlane.xlu0 %190
      %v192 = vadd.f32 %v189, %v191
      %v193 = vrot.slane %v192, 4
      %v194 = vadd.f32 %v192, %v193
      %v195 = vrot.slane %v194, 2
      %v196 = vadd.f32 %v194, %v195
      %v197 = vrot.slane %v196, 1
      %v198 = vadd.f32 %v196, %v197
      %vm199 = vcmask 0
      %200 = vst.msk [vmem:[#allocation7] sm:$0x1] %vm199, %v198
    $region17: #{tpu_custom_call.1} parent=1 // pred_fallthru
      _
    // Predicated region
    $region18: #{tpu_custom_call.1} parent=1 // pred_check
      _
    $region19: #{tpu_custom_call.1} parent=1 // pred_check_branch
      %202 = sbr.rel (0) target = $region21
    $region20: #{tpu_custom_call.1} parent=1 // pred_region
      %204 = vsyncadd [#allocation6], 0
      %s205 = sshll.u32 [#allocation5], 4
      %s206 = int_to_ptr.vmem [resolvable:$true] %s205
      %s207 = sshll.u32 %s4, 4
      %s208 = int_to_ptr.hbm [resolvable:$true] %s207
      %213 = dma.vmem_to_hbm [thread:$0]  %s206, 256, %s208, [#allocation6], 128, 128, 8
    $region21: #{tpu_custom_call.1} parent=1 // pred_fallthru
      _
    // Predicated region
    $region22: #{tpu_custom_call.1} parent=1 // pred_check
      _
    $region23: #{tpu_custom_call.1} parent=1 // pred_check_branch
      %215 = sbr.rel (0) target = $region25
    $region24: #{tpu_custom_call.1} parent=1 // pred_region
      %217 = vsyncadd [#allocation8], 0
      %s219 = sshll.u32 [#allocation7], 4
      %s220 = int_to_ptr.vmem [resolvable:$true] %s219
      %s221 = sshll.u32 %s5, 4
      %s222 = int_to_ptr.hbm [resolvable:$true] %s221
      %224 = dma.vmem_to_hbm [thread:$0]  %s220, 16, %s222, [#allocation8]
    $region25: #{tpu_custom_call.1} parent=1 // pred_fallthru
      _
    // Predicated region
    $region26: #{tpu_custom_call.1} parent=1 // pred_check
      _
    $region27: #{tpu_custom_call.1} parent=1 // pred_check_branch
      %226 = sbr.rel (0) target = $region29
    $region28: #{tpu_custom_call.1} parent=1 // pred_region
      %228 = dma.done [#allocation6], 256
    $region29: #{tpu_custom_call.1} parent=1 // pred_fallthru
      _
    // Predicated region
    $region30: #{tpu_custom_call.1} parent=1 // pred_check
      _
    $region31: #{tpu_custom_call.1} parent=1 // pred_check_branch
      %230 = sbr.rel (0) target = $region33
    $region32: #{tpu_custom_call.1} parent=1 // pred_region
      %232 = dma.done [#allocation8], 16
    $region33: #{tpu_custom_call.1} parent=1 // pred_fallthru
      _
    %233 = vsyncpa [#allocation6], 1
    %234 = vsyncpa [#allocation8], 1

</llo_original>
